<compile_context>
chip_gen: v7x
topology: tpu7x:2x2x1
jax: 0.10.0
libtpu: 0.0.40
codegen_flags: <defaults>
</compile_context>

<pallas_src>
import functools

import jax
import jax.numpy as jnp
from jax.experimental import pallas as pl
from jax.experimental.pallas import tpu as pltpu


LANES = 128         # lane width
SUBLANES = 8        # f32 sublane tile
MAX_TILE_R = 2048   # 2048 x 128 f32 = 1 MiB per input block


def _round_up(x, m):
    return ((x + m - 1) // m) * m


def _sublane_align(dtype):
    """Native sublane tiling: 8 for 32-bit, 16 for 16-bit, 32 for 8-bit dtypes."""
    bits = jnp.dtype(dtype).itemsize * 8
    return max(SUBLANES, SUBLANES * (32 // max(bits, 1)))


def _tversky_partials_kernel(x_ref, t_ref, out_ref, *, tile_r, valid_rows,
                             needs_mask):
    """Per-block (8, 128) lane/sublane partial sums of [p*t, p, t]."""
    # Cast to f32 in-kernel so HBM traffic stays at the caller's dtype width.
    p = jax.nn.sigmoid(x_ref[...].astype(jnp.float32))
    t = t_ref[...].astype(jnp.float32)

    if needs_mask:
        # Zero rows beyond the true extent (ragged final block: the DMA'd
        # padding rows are undefined, so mask them out before any reduction).
        row = pl.program_id(0) * tile_r + jax.lax.broadcasted_iota(
            jnp.int32, p.shape, 0)
        in_bounds = row < valid_rows
        p = jnp.where(in_bounds, p, 0.0)
        t = jnp.where(in_bounds, t, 0.0)

    def vreg_sum(v):
        # (tile_r, 128) -> (tile_r//8, 8, 128); axis-0 sum is pure vreg-wise
        # VPU adds -- no cross-lane/sublane XLU work in the hot loop.
        return v.reshape(v.shape[0] // SUBLANES, SUBLANES, LANES).sum(axis=0)

    out_ref[0, 0] = vreg_sum(p * t)   # sum(p * t)  -> true positives
    out_ref[0, 1] = vreg_sum(p)       # sum(p)
    out_ref[0, 2] = vreg_sum(t)       # sum(t)


@functools.partial(
    jax.jit, static_argnames=("alpha", "beta", "smooth", "max_tile_rows"))
def tversky_loss(inputs, targets, alpha=0.5, beta=0.5, smooth=1.0,
                 max_tile_rows=MAX_TILE_R):
    """Pallas implementation of TverskyLoss.forward (returns a scalar)."""
    x = jnp.reshape(inputs, (-1,))   # free reshape; keep caller dtype in HBM
    t = jnp.reshape(targets, (-1,))
    if x.dtype == jnp.bool_:
        x = x.astype(jnp.float32)
    if t.dtype == jnp.bool_:
        t = t.astype(jnp.float32)

    n = x.shape[0]
    align = max(_sublane_align(x.dtype), _sublane_align(t.dtype))

    rows_full = n // LANES                      # complete 128-lane rows
    rows_main = (rows_full // align) * align    # sublane-aligned row count
    n_main = rows_main * LANES                  # elements handled by the kernel
    n_tail = n - n_main                         # small tail done in plain JAX

    sum_pt = jnp.float32(0.0)
    sum_p = jnp.float32(0.0)
    sum_t = jnp.float32(0.0)

    if rows_main > 0:
        cap = max(align, (max_tile_rows // align) * align)
        tile_r = min(cap, rows_main)            # multiple of align, <= rows_main
        num_blocks = pl.cdiv(rows_main, tile_r)
        needs_mask = (rows_main % tile_r) != 0  # ragged final block only

        # Identity slice (elided) when the whole array is row-aligned; only a
        # prefix copy in the rare non-aligned case.
        x_main = x if n_main == n else x[:n_main]
        t_main = t if n_main == n else t[:n_main]
        x2 = x_main.reshape(rows_main, LANES)
        t2 = t_main.reshape(rows_main, LANES)

        kernel = functools.partial(
            _tversky_partials_kernel,
            tile_r=tile_r, valid_rows=rows_main, needs_mask=needs_mask)

        partials = pl.pallas_call(
            kernel,
            out_shape=jax.ShapeDtypeStruct(
                (num_blocks, 3, SUBLANES, LANES), jnp.float32),
            grid_spec=pltpu.PrefetchScalarGridSpec(
                num_scalar_prefetch=0,
                grid=(num_blocks,),
                in_specs=[
                    pl.BlockSpec((tile_r, LANES), lambda i: (i, 0)),
                    pl.BlockSpec((tile_r, LANES), lambda i: (i, 0)),
                ],
                out_specs=pl.BlockSpec(
                    (1, 3, SUBLANES, LANES), lambda i: (i, 0, 0, 0)),
            ),
            compiler_params=pltpu.CompilerParams(
                dimension_semantics=("parallel",),
            ),
        )(x2, t2)

        sums = jnp.sum(partials, axis=(0, 2, 3))   # (3,) f32
        sum_pt, sum_p, sum_t = sums[0], sums[1], sums[2]

    if n_tail > 0:
        # Tiny tail (< align*128 + 127 elements): plain-JAX reduction avoids
        # materializing a padded copy of the whole array in HBM.
        xt = x[n_main:].astype(jnp.float32)
        tt = t[n_main:].astype(jnp.float32)
        pt = jax.nn.sigmoid(xt)
        sum_pt = sum_pt + jnp.sum(pt * tt)
        sum_p = sum_p + jnp.sum(pt)
        sum_t = sum_t + jnp.sum(tt)

    true_pos = sum_pt
    false_neg = sum_t - sum_pt   # sum((1 - p) * t)
    false_pos = sum_p - sum_pt   # sum(p * (1 - t))
    tversky_index = (true_pos + smooth) / (
        true_pos + alpha * false_neg + beta * false_pos + smooth)
    return 1.0 - tversky_index


def _reference(inputs, targets, alpha=0.5, beta=0.5, smooth=1.0):
    p = jax.nn.sigmoid(inputs.astype(jnp.float32)).reshape(-1)
    t = targets.astype(jnp.float32).reshape(-1)
    tp = jnp.sum(p * t)
    fn = jnp.sum((1.0 - p) * t)
    fp = jnp.sum(p * (1.0 - t))
    return 1.0 - (tp + smooth) / (tp + alpha * fn + beta * fp + smooth)


if __name__ == "__main__":
    key = jax.random.PRNGKey(0)
    k1, k2, k3, k4, k5, k6 = jax.random.split(key, 6)

    # 1) Segmentation-style logits/targets (NCHW), 128-aligned size.
    inputs = jax.random.normal(k1, (2, 4, 16, 16), dtype=jnp.float32)
    targets = (jax.random.uniform(k2, (2, 4, 16, 16)) > 0.5).astype(jnp.float32)
    loss = tversky_loss(inputs, targets)
    jax.block_until_ready(loss)
    ref = _reference(inputs, targets)
    assert jnp.allclose(loss, ref, rtol=1e-5, atol=1e-5), (loss, ref)

    # 2) bf16 logits stay narrow in HBM; cast happens in-kernel.
    inputs_bf = jax.random.normal(k3, (2, 4, 16, 16), dtype=jnp.bfloat16)
    targets_bf = (jax.random.uniform(k4, (2, 4, 16, 16)) > 0.5).astype(jnp.float32)
    loss_bf = tversky_loss(inputs_bf, targets_bf)
    jax.block_until_ready(loss_bf)
    ref_bf = _reference(inputs_bf, targets_bf)
    assert jnp.allclose(loss_bf, ref_bf, rtol=1e-4, atol=1e-4), (loss_bf, ref_bf)

    # 3) Ragged shape: exercises the in-kernel row mask (small tile cap) and
    #    the plain-JAX tail for the non-row-aligned remainder.
    inputs_r = jax.random.normal(k5, (2, 3, 37, 53), dtype=jnp.float32)
    targets_r = (jax.random.uniform(k6, (2, 3, 37, 53)) > 0.5).astype(jnp.float32)
    loss_r = tversky_loss(inputs_r, targets_r, max_tile_rows=16)
    jax.block_until_ready(loss_r)
    ref_r = _reference(inputs_r, targets_r)
    assert jnp.allclose(loss_r, ref_r, rtol=1e-5, atol=1e-5), (loss_r, ref_r)

    print("KERNEL_OK")
</pallas_src>

<mosaic_0001>
module attributes {stable_mosaic.version = 11 : i64} {
  func.func @_tversky_partials_kernel(%arg0: i32, %arg1: memref<16x128xf32, #tpu.memory_space<vmem>>, %arg2: memref<16x128xf32, #tpu.memory_space<vmem>>, %arg3: memref<1x3x8x128xf32, #tpu.memory_space<vmem>>) attributes {dimension_semantics = [#tpu.dimension_semantics<parallel>], iteration_bounds = array<i64: 1>, scalar_prefetch = 0 : i64, scratch_operands = 0 : i64, tpu.core_type = #tpu.core_type<tc>, window_params = [{transform_indices = @transform_0, window_bounds = array<i64: 16, 128>}, {transform_indices = @transform_1, window_bounds = array<i64: 16, 128>}, {transform_indices = @transform_2, window_bounds = array<i64: 1, 3, 8, 128>}]} {
    %c0 = arith.constant 0 : index
    %c0_0 = arith.constant 0 : index
    %0 = vector.load %arg1[%c0, %c0_0] : memref<16x128xf32, #tpu.memory_space<vmem>>, vector<16x128xf32>
    %1 = arith.negf %0 : vector<16x128xf32>
    %2 = math.exp %1 : vector<16x128xf32>
    %cst = arith.constant 1.000000e+00 : f32
    %3 = vector.broadcast %cst : f32 to vector<16x128xf32>
    %4 = arith.addf %3, %2 : vector<16x128xf32>
    %5 = arith.divf %3, %4 : vector<16x128xf32>
    %c0_1 = arith.constant 0 : index
    %c0_2 = arith.constant 0 : index
    %6 = vector.load %arg2[%c0_1, %c0_2] : memref<16x128xf32, #tpu.memory_space<vmem>>, vector<16x128xf32>
    %7 = arith.mulf %5, %6 : vector<16x128xf32>
    %8 = vector.shape_cast %7 : vector<16x128xf32> to vector<2x8x128xf32>
    %cst_3 = arith.constant dense<0.000000e+00> : vector<8x128xf32>
    %9 = vector.multi_reduction <add>, %8, %cst_3 [0] : vector<2x8x128xf32> to vector<8x128xf32>
    %c0_4 = arith.constant 0 : index
    %c0_5 = arith.constant 0 : index
    %c0_6 = arith.constant 0 : index
    %c0_7 = arith.constant 0 : index
    %10 = vector.load %arg3[%c0_4, %c0_5, %c0_6, %c0_7] : memref<1x3x8x128xf32, #tpu.memory_space<vmem>>, vector<1x1x8x128xf32>
    %11 = vector.shape_cast %10 : vector<1x1x8x128xf32> to vector<8x128xf32>
    %12 = vector.shape_cast %9 : vector<8x128xf32> to vector<1x1x8x128xf32>
    tpu.vector_store %arg3[%c0_4, %c0_5, %c0_6, %c0_7], %12 {strides = array<i32>} : memref<1x3x8x128xf32, #tpu.memory_space<vmem>>, vector<1x1x8x128xf32>,
    %13 = vector.shape_cast %5 : vector<16x128xf32> to vector<2x8x128xf32>
    %cst_8 = arith.constant dense<0.000000e+00> : vector<8x128xf32>
    %14 = vector.multi_reduction <add>, %13, %cst_8 [0] : vector<2x8x128xf32> to vector<8x128xf32>
    %c0_9 = arith.constant 0 : index
    %c1 = arith.constant 1 : index
    %c0_10 = arith.constant 0 : index
    %c0_11 = arith.constant 0 : index
    %15 = vector.load %arg3[%c0_9, %c1, %c0_10, %c0_11] : memref<1x3x8x128xf32, #tpu.memory_space<vmem>>, vector<1x1x8x128xf32>
    %16 = vector.shape_cast %15 : vector<1x1x8x128xf32> to vector<8x128xf32>
    %17 = vector.shape_cast %14 : vector<8x128xf32> to vector<1x1x8x128xf32>
    tpu.vector_store %arg3[%c0_9, %c1, %c0_10, %c0_11], %17 {strides = array<i32>} : memref<1x3x8x128xf32, #tpu.memory_space<vmem>>, vector<1x1x8x128xf32>,
    %18 = vector.shape_cast %6 : vector<16x128xf32> to vector<2x8x128xf32>
    %cst_12 = arith.constant dense<0.000000e+00> : vector<8x128xf32>
    %19 = vector.multi_reduction <add>, %18, %cst_12 [0] : vector<2x8x128xf32> to vector<8x128xf32>
    %c0_13 = arith.constant 0 : index
    %c2 = arith.constant 2 : index
    %c0_14 = arith.constant 0 : index
    %c0_15 = arith.constant 0 : index
    %20 = vector.load %arg3[%c0_13, %c2, %c0_14, %c0_15] : memref<1x3x8x128xf32, #tpu.memory_space<vmem>>, vector<1x1x8x128xf32>
    %21 = vector.shape_cast %20 : vector<1x1x8x128xf32> to vector<8x128xf32>
    %22 = vector.shape_cast %19 : vector<8x128xf32> to vector<1x1x8x128xf32>
    tpu.vector_store %arg3[%c0_13, %c2, %c0_14, %c0_15], %22 {strides = array<i32>} : memref<1x3x8x128xf32, #tpu.memory_space<vmem>>, vector<1x1x8x128xf32>,
    return
  }
  func.func @transform_0(%arg0: i32) -> (i32, i32) {
    %c0_i32 = arith.constant 0 : i32
    %c0_i32_0 = arith.constant 0 : i32
    return %arg0, %c0_i32 : i32, i32
  }
  func.func @transform_1(%arg0: i32) -> (i32, i32) {
    %c0_i32 = arith.constant 0 : i32
    %c0_i32_0 = arith.constant 0 : i32
    return %arg0, %c0_i32 : i32, i32
  }
  func.func @transform_2(%arg0: i32) -> (i32, i32, i32, i32) {
    %c0_i32 = arith.constant 0 : i32
    %c0_i32_0 = arith.constant 0 : i32
    %c0_i32_1 = arith.constant 0 : i32
    %c0_i32_2 = arith.constant 0 : i32
    return %arg0, %c0_i32, %c0_i32_0, %c0_i32_1 : i32, i32, i32, i32
  }
}

</mosaic_0001>

<llo_original>
// kernel: tversky_loss.1
$region0: #{tversky_loss.1}
  #allocation0 [shape = 'u32[]', space=smem, size = 0x4, offset = 0x4, fixed_abs, tag = 'smem constant byte address 0x4 - core index']
  #allocation1 [shape = 'u32[144,128]{1,0:T(1,128)}', space=vmem, size = 0x12000, scoped, tag = 'internal scratch']
  %s0 = inlined_call_operand.vmem [shape: f32[16,128], index: 0, kind: input, shape index: {}]
  %s1 = inlined_call_operand.vmem [shape: f32[16,128], index: 1, kind: input, shape index: {}]
  %s2 = inlined_call_operand.vmem [shape: f32[1,3,8,128], index: 2, kind: output, shape index: {}]
  %s3 = sld [smem:[#allocation0]]
  $region18: #{tversky_loss.1} parent=0
    _
  %s5 = ssub.s32 1, %s3
  %s6 = scalar_select 0, %s5, %s3
  // Predicated region
  $region2: #{tversky_loss.1} parent=0 // pred_check
    _
  $region3: #{tversky_loss.1} parent=0 // pred_check_branch
    %8 = sbr.rel (0) target = $region5
  $region4: #{tversky_loss.1} parent=0 // pred_region
    _
  $region5: #{tversky_loss.1} parent=0 // pred_fallthru
    _
  // Predicated region
  $region6: #{tversky_loss.1} parent=0 // pred_check
    _
  $region7: #{tversky_loss.1} parent=0 // pred_check_branch
    %10 = sbr.rel (0) target = $region9
  $region8: #{tversky_loss.1} parent=0 // pred_region
    _
  $region9: #{tversky_loss.1} parent=0 // pred_fallthru
    _
  %v11 = vld [vmem:[%s0] sm:$0xff]
  %v12 = vld [vmem:[%s0 + $0x8] sm:$0xff]
  %v13 = vxor.u32 %v11, 2147483648
  %v14 = vxor.u32 %v12, 2147483648
  %v15 = vmul.f32 %v13, 1.442695
  %v16 = vpow.pop %v15
  %v17 = vmul.f32 %v14, 1.442695
  %v18 = vpow.pop %v17
  %v19 = vadd.f32 %v16, 1.0
  %v20 = vadd.f32 %v18, 1.0
  %v21 = vrcp.pop %v19
  %v22 = vmul.f32 1.0, %v21
  %v23 = vrcp.pop %v20
  %v24 = vmul.f32 1.0, %v23
  %v25 = vld [vmem:[%s1] sm:$0xff]
  %v26 = vld [vmem:[%s1 + $0x8] sm:$0xff]
  %v27 = vmul.f32 %v22, %v25
  %v28 = vmul.f32 %v24, %v26
  %v29 = vadd.f32 %v27, %v28
  %30 = vst [vmem:[%s2] sm:$0xff] %v29
  %v31 = vadd.f32 %v22, %v24
  %s32 = scalar_lea.vmem %s2, 8
  %33 = vst [vmem:[%s32] sm:$0xff] %v31
  %v34 = vadd.f32 %v25, %v26
  %s35 = scalar_lea.vmem %s2, 16
  %36 = vst [vmem:[%s35] sm:$0xff] %v34
  // Predicated region
  $region10: #{tversky_loss.1} parent=0 // pred_check
    _
  $region11: #{tversky_loss.1} parent=0 // pred_check_branch
    %38 = sbr.rel (0) target = $region13
  $region12: #{tversky_loss.1} parent=0 // pred_region
    _
  $region13: #{tversky_loss.1} parent=0 // pred_fallthru
    _
  // Predicated region
  $region14: #{tversky_loss.1} parent=0 // pred_check
    _
  $region15: #{tversky_loss.1} parent=0 // pred_check_branch
    %40 = sbr.rel (0) target = $region17
  $region16: #{tversky_loss.1} parent=0 // pred_region
    _
  $region17: #{tversky_loss.1} parent=0 // pred_fallthru
    _

</llo_original>
